<compile_context>
chip_gen: v6e
topology: v6e:2x2x1
jax: 0.10.0
libtpu: 0.0.40
codegen_flags: <defaults>
</compile_context>

<pallas_src>
import functools
import math

import jax
import jax.numpy as jnp
from jax.experimental import pallas as pl
from jax.experimental.pallas import tpu as pltpu


def eca_kernel(x_ref, w_ref, o_ref, *, channels):
    # x_ref : (ROWS, HW)  input tile, ROWS = tb * C (image-major, channel-minor rows)
    # w_ref : (k,)        conv taps, pre-divided by H*W (SMEM)
    # o_ref : (ROWS, HW)  output tile
    rows, _ = x_ref.shape
    k = w_ref.shape[0]
    pad = (k - 1) // 2

    # 1) Global average pool: widening f32 sum over the lane (spatial) axis.  The
    #    1/(H*W) factor is folded into the taps.  The tile value is consumed by the
    #    reduce immediately and is NOT kept live across the conv/sigmoid (avoids
    #    spilling a multi-MiB tile to a VMEM copy).
    y = jnp.sum(x_ref[...], axis=-1, keepdims=True, dtype=jnp.float32)      # (rows, 1)

    # 2) k-tap conv along the channel axis on the in-register pooled vector.  A row
    #    shift of d is a channel shift of d; the iota mask zeroes taps that would
    #    cross an image boundary, which is exactly Conv1d's zero padding (block row
    #    offsets are always multiples of C, so block edges coincide with image edges).
    if pad > 0:
        zpad = jnp.zeros((pad, 1), jnp.float32)
        yp = jnp.concatenate([zpad, y, zpad], axis=0)                       # (rows+2p, 1)
    else:
        yp = y
    ch = jax.lax.broadcasted_iota(jnp.int32, (rows, 1), 0) % channels
    z = jnp.zeros((rows, 1), jnp.float32)
    for t in range(k):                                                      # static unroll
        d = t - pad
        shifted = yp[t:t + rows, :]                                         # == y[r + d]
        if d != 0:
            valid = jnp.logical_and(ch + d >= 0, ch + d < channels)
            shifted = jnp.where(valid, shifted, 0.0)
        z = z + w_ref[t] * shifted

    s = jax.nn.sigmoid(z).astype(o_ref.dtype)                               # (rows, 1)

    # 3) Broadcasted per-channel scale — the only full-tile elementwise work; this is
    #    a second, independent read of the tile so its live range stays minimal.
    o_ref[...] = x_ref[...] * s


def _vmem_capacity_bytes():
    """Per-generation VMEM capacity (v5e/v6e: 128 MiB, v7x: 64 MiB)."""
    try:
        return int(pltpu.get_tpu_info().vmem_capacity_bytes)
    except Exception:
        pass
    try:
        kind = jax.devices()[0].device_kind.lower()
    except Exception:
        kind = ""
    if "v5" in kind or "v6" in kind:
        return 128 * 1024 * 1024
    return 64 * 1024 * 1024          # v7x / unknown: be conservative


def _num_tensorcores():
    """TensorCores sharing a 'parallel' grid axis (v7x: 2, v5e/v6e: 1)."""
    try:
        if "v7" in jax.devices()[0].device_kind.lower():
            return 2
    except Exception:
        pass
    return 1


def eca_forward(x, conv_weight):
    """ECA forward. x: (B, C, H, W). conv_weight: (k,) taps of Conv1d(1, 1, k, bias=False)."""
    B, C, H, W = x.shape
    HW = H * W
    k = int(conv_weight.shape[0])
    assert k % 2 == 1, "ECA uses odd kernel sizes (Conv1d 'same' padding assumes odd k)"

    # Free layout change: NCHW -> (B*C, H*W); spatial on lanes, dense rows on sublanes.
    xf = x.reshape(B * C, HW)
    # Fold the average-pool 1/(H*W) into the taps (saves a full-vector scale in-kernel).
    taps = conv_weight.reshape(k).astype(jnp.float32) / float(HW)

    itemsize = jnp.dtype(x.dtype).itemsize
    per_image = C * HW * itemsize

    # --- tile-size selection against the actual chip's VMEM ------------------------
    vmem_cap = _vmem_capacity_bytes()
    tile_budget = int(vmem_cap * 0.6)            # 2 pipeline buffers x (in + out) tiles
    denom = 4 * per_image + 64 * C               # + tiny pooled-vector temporaries
    cap_images = max(1, tile_budget // max(denom, 1))

    # Sublane density: the block row count tb*C must be a multiple of 8 unless the
    # block covers all B*C rows; g is the image granularity that keeps rows 8-aligned.
    g = 8 // math.gcd(C, 8)
    candidates = []
    if cap_images >= B:
        candidates.append(B)
    m = (min(cap_images, B) // g) * g
    while m >= g:
        if m not in candidates:
            candidates.append(m)
        m -= g
    if not candidates:
        candidates = [min(g, B)]                 # rare: even g images overflow the budget

    tb = candidates[0]                           # largest tile that fits (no forced split)
    n_tc = _num_tensorcores()
    if n_tc > 1 and B > 1:
        # Balanced megacore split: largest tile whose step count divides evenly across
        # the TensorCores, minimizing padded work (an odd split idles one TC).
        best = None
        for t in candidates:
            steps = -(-B // t)
            if steps % n_tc:
                continue
            key = (steps * t - B, -t)
            if best is None or key < best[0]:
                best = (key, t)
        if best is not None:
            tb = best[1]

    rows_per_block = tb * C
    grid = (pl.cdiv(B, tb),)

    # Per-generation VMEM cap: enough for the double-buffered in+out tiles plus
    # headroom, never above ~90% of the chip's physical VMEM.
    vmem_limit = min(int(vmem_cap * 0.9),
                     max(4 * tb * per_image + (4 << 20), 32 << 20))

    out = pl.pallas_call(
        functools.partial(eca_kernel, channels=C),
        out_shape=jax.ShapeDtypeStruct((B * C, HW), x.dtype),
        grid_spec=pltpu.PrefetchScalarGridSpec(
            num_scalar_prefetch=0,
            grid=grid,
            in_specs=[
                pl.BlockSpec((rows_per_block, HW), lambda b: (b, 0)),
                # Taps stay in SMEM, out of the per-step DMA path.
                pl.BlockSpec(memory_space=pltpu.MemorySpace.SMEM),
            ],
            out_specs=pl.BlockSpec((rows_per_block, HW), lambda b: (b, 0)),
        ),
        compiler_params=pltpu.CompilerParams(
            dimension_semantics=("parallel",),
            vmem_limit_bytes=vmem_limit,
        ),
    )(xf, taps)

    return out.reshape(B, C, H, W)


def eca_reference(x, conv_weight):
    """Pure-JAX reference mirroring the PyTorch forward."""
    B, C, H, W = x.shape
    k = conv_weight.shape[0]
    pad = (k - 1) // 2
    y = jnp.mean(x, axis=(2, 3))                        # (B, C)
    yp = jnp.pad(y, ((0, 0), (pad, pad)))               # (B, C + 2*pad)
    z = jnp.zeros_like(y)
    for t in range(k):
        z = z + conv_weight[t] * yp[:, t:t + C]
    s = jax.nn.sigmoid(z)                               # (B, C)
    return x * s[:, :, None, None]


if __name__ == "__main__":
    key = jax.random.PRNGKey(0)
    kx, kw = jax.random.split(key)

    B, C, H, W = 2, 4, 16, 16
    k_size = 3

    x = jax.random.normal(kx, (B, C, H, W), dtype=jnp.float32)
    # Deterministic synthetic Conv1d(1, 1, 3, bias=False) weight taps.
    conv_weight = jax.random.normal(kw, (k_size,), dtype=jnp.float32) * 0.5

    out = jax.block_until_ready(eca_forward(x, conv_weight))

    ref = eca_reference(x, conv_weight)
    assert out.shape == (B, C, H, W)
    assert jnp.allclose(out, ref, atol=1e-5, rtol=1e-5), "mismatch vs reference"

    print("KERNEL_OK")
</pallas_src>

<mosaic_0001>
module attributes {stable_mosaic.version = 11 : i64} {
  func.func @eca_kernel(%arg0: i32, %arg1: memref<8x256xf32, #tpu.memory_space<vmem>>, %arg2: memref<3xf32, #tpu.memory_space<smem>>, %arg3: memref<8x256xf32, #tpu.memory_space<vmem>>) attributes {dimension_semantics = [#tpu.dimension_semantics<parallel>], iteration_bounds = array<i64: 1>, scalar_prefetch = 0 : i64, scratch_operands = 0 : i64, tpu.core_type = #tpu.core_type<tc>, window_params = [{transform_indices = @transform_0, window_bounds = array<i64: 8, 256>}, {transform_indices = @transform_1, window_bounds = array<i64: 3>}, {transform_indices = @transform_2, window_bounds = array<i64: 8, 256>}]} {
    %c0 = arith.constant 0 : index
    %c0_0 = arith.constant 0 : index
    %0 = vector.load %arg1[%c0, %c0_0] : memref<8x256xf32, #tpu.memory_space<vmem>>, vector<8x256xf32>
    %cst = arith.constant dense<0.000000e+00> : vector<8xf32>
    %1 = vector.multi_reduction <add>, %0, %cst [1] : vector<8x256xf32> to vector<8xf32>
    %2 = vector.shape_cast %1 : vector<8xf32> to vector<8x1xf32>
    %cst_1 = arith.constant 0.000000e+00 : f32
    %3 = vector.broadcast %cst_1 : f32 to vector<1x1xf32>
    %4 = tpu.concatenate %3, %2, %3 in 0 : vector<1x1xf32>, vector<8x1xf32>, vector<1x1xf32> -> vector<10x1xf32>
    %5 = tpu.iota {dimensions = array<i32: 0>} : vector<8x1xi32>
    %c4_i32 = arith.constant 4 : i32
    %c0_i32 = arith.constant 0 : i32
    %6 = arith.cmpi eq, %c4_i32, %c0_i32 : i32
    %c1_i32 = arith.constant 1 : i32
    %7 = arith.select %6, %c1_i32, %c4_i32 : i32
    %8 = vector.broadcast %7 : i32 to vector<8x1xi32>
    %9 = arith.remsi %5, %8 : vector<8x1xi32>
    %c0_i32_2 = arith.constant 0 : i32
    %10 = vector.broadcast %c0_i32_2 : i32 to vector<8x1xi32>
    %11 = arith.cmpi ne, %9, %10 : vector<8x1xi32>
    %c0_i32_3 = arith.constant 0 : i32
    %12 = vector.broadcast %c0_i32_3 : i32 to vector<8x1xi32>
    %13 = arith.cmpi slt, %9, %12 : vector<8x1xi32>
    %c0_i32_4 = arith.constant 0 : i32
    %14 = arith.cmpi slt, %7, %c0_i32_4 : i32
    %15 = vector.broadcast %14 : i1 to vector<8x1xi1>
    %16 = vector.broadcast %15 : vector<8x1xi1> to vector<8x1xi1>
    %17 = arith.xori %13, %16 : vector<8x1xi1>
    %18 = arith.andi %17, %11 : vector<8x1xi1>
    %19 = vector.broadcast %7 : i32 to vector<8x1xi32>
    %20 = arith.addi %9, %19 : vector<8x1xi32>
    %21 = arith.select %18, %20, %9 : vector<8x1xi1>, vector<8x1xi32>
    %cst_5 = arith.constant 0.000000e+00 : f32
    %22 = vector.broadcast %cst_5 : f32 to vector<8x1xf32>
    %23 = vector.extract_strided_slice %4 {offsets = [0, 0], sizes = [8, 1], strides = [1, 1]} : vector<10x1xf32> to vector<8x1xf32>
    %c-1_i32 = arith.constant -1 : i32
    %24 = vector.broadcast %c-1_i32 : i32 to vector<8x1xi32>
    %25 = arith.addi %21, %24 : vector<8x1xi32>
    %c0_i32_6 = arith.constant 0 : i32
    %26 = vector.broadcast %c0_i32_6 : i32 to vector<8x1xi32>
    %27 = arith.cmpi sge, %25, %26 : vector<8x1xi32>
    %c-1_i32_7 = arith.constant -1 : i32
    %28 = vector.broadcast %c-1_i32_7 : i32 to vector<8x1xi32>
    %29 = arith.addi %21, %28 : vector<8x1xi32>
    %c4_i32_8 = arith.constant 4 : i32
    %30 = vector.broadcast %c4_i32_8 : i32 to vector<8x1xi32>
    %31 = arith.cmpi slt, %29, %30 : vector<8x1xi32>
    %32 = arith.andi %27, %31 : vector<8x1xi1>
    %cst_9 = arith.constant 0.000000e+00 : f32
    %33 = vector.broadcast %cst_9 : f32 to vector<8x1xf32>
    %34 = arith.select %32, %23, %33 : vector<8x1xi1>, vector<8x1xf32>
    %c0_10 = arith.constant 0 : index
    %35 = memref.load %arg2[%c0_10] : memref<3xf32, #tpu.memory_space<smem>>
    %36 = vector.broadcast %35 : f32 to vector<8x1xf32>
    %37 = arith.mulf %36, %34 : vector<8x1xf32>
    %38 = arith.addf %22, %37 : vector<8x1xf32>
    %39 = vector.extract_strided_slice %4 {offsets = [1, 0], sizes = [8, 1], strides = [1, 1]} : vector<10x1xf32> to vector<8x1xf32>
    %c1 = arith.constant 1 : index
    %40 = memref.load %arg2[%c1] : memref<3xf32, #tpu.memory_space<smem>>
    %41 = vector.broadcast %40 : f32 to vector<8x1xf32>
    %42 = arith.mulf %41, %39 : vector<8x1xf32>
    %43 = arith.addf %38, %42 : vector<8x1xf32>
    %44 = vector.extract_strided_slice %4 {offsets = [2, 0], sizes = [8, 1], strides = [1, 1]} : vector<10x1xf32> to vector<8x1xf32>
    %c1_i32_11 = arith.constant 1 : i32
    %45 = vector.broadcast %c1_i32_11 : i32 to vector<8x1xi32>
    %46 = arith.addi %21, %45 : vector<8x1xi32>
    %c0_i32_12 = arith.constant 0 : i32
    %47 = vector.broadcast %c0_i32_12 : i32 to vector<8x1xi32>
    %48 = arith.cmpi sge, %46, %47 : vector<8x1xi32>
    %c1_i32_13 = arith.constant 1 : i32
    %49 = vector.broadcast %c1_i32_13 : i32 to vector<8x1xi32>
    %50 = arith.addi %21, %49 : vector<8x1xi32>
    %c4_i32_14 = arith.constant 4 : i32
    %51 = vector.broadcast %c4_i32_14 : i32 to vector<8x1xi32>
    %52 = arith.cmpi slt, %50, %51 : vector<8x1xi32>
    %53 = arith.andi %48, %52 : vector<8x1xi1>
    %cst_15 = arith.constant 0.000000e+00 : f32
    %54 = vector.broadcast %cst_15 : f32 to vector<8x1xf32>
    %55 = arith.select %53, %44, %54 : vector<8x1xi1>, vector<8x1xf32>
    %c2 = arith.constant 2 : index
    %56 = memref.load %arg2[%c2] : memref<3xf32, #tpu.memory_space<smem>>
    %57 = vector.broadcast %56 : f32 to vector<8x1xf32>
    %58 = arith.mulf %57, %55 : vector<8x1xf32>
    %59 = arith.addf %43, %58 : vector<8x1xf32>
    %60 = arith.negf %59 : vector<8x1xf32>
    %61 = math.exp %60 : vector<8x1xf32>
    %cst_16 = arith.constant 1.000000e+00 : f32
    %62 = vector.broadcast %cst_16 : f32 to vector<8x1xf32>
    %63 = arith.addf %62, %61 : vector<8x1xf32>
    %64 = arith.divf %62, %63 : vector<8x1xf32>
    %c0_17 = arith.constant 0 : index
    %c0_18 = arith.constant 0 : index
    %65 = vector.load %arg1[%c0_17, %c0_18] : memref<8x256xf32, #tpu.memory_space<vmem>>, vector<8x256xf32>
    %66 = vector.broadcast %64 : vector<8x1xf32> to vector<8x256xf32>
    %67 = arith.mulf %65, %66 : vector<8x256xf32>
    %c0_19 = arith.constant 0 : index
    %c0_20 = arith.constant 0 : index
    %68 = vector.load %arg3[%c0_19, %c0_20] : memref<8x256xf32, #tpu.memory_space<vmem>>, vector<8x256xf32>
    tpu.vector_store %arg3[%c0_19, %c0_20], %67 {strides = array<i32>} : memref<8x256xf32, #tpu.memory_space<vmem>>, vector<8x256xf32>,
    return
  }
  func.func @transform_0(%arg0: i32) -> (i32, i32) {
    %c0_i32 = arith.constant 0 : i32
    %c0_i32_0 = arith.constant 0 : i32
    return %arg0, %c0_i32 : i32, i32
  }
  func.func @transform_1(%arg0: i32) -> i32 {
    %c0_i32 = arith.constant 0 : i32
    %c0_i32_0 = arith.constant 0 : i32
    return %c0_i32 : i32
  }
  func.func @transform_2(%arg0: i32) -> (i32, i32) {
    %c0_i32 = arith.constant 0 : i32
    %c0_i32_0 = arith.constant 0 : i32
    return %arg0, %c0_i32 : i32, i32
  }
}

</mosaic_0001>

<llo_original>
// kernel: tpu_custom_call.1
$region0: #{tpu_custom_call.1}
  #allocation0 [shape = 'u32[]', space=smem, size = 0x4, offset = 0x4, fixed_abs, tag = 'smem constant byte address 0x4 - core index']
  #allocation1 [shape = 'u32[144,128]{1,0:T(1,128)}', space=vmem, size = 0x12000, scoped, tag = 'internal scratch']
  %s0 = inlined_call_operand.hbm [shape: f32[8,256], index: 0, kind: input, shape index: {}]
  %s1 = inlined_call_operand.vmem [shape: f32[3], index: 1, kind: input, shape index: {}]
  %s2 = inlined_call_operand.hbm [shape: f32[8,256], index: 2, kind: output, shape index: {}]
  %s3 = sld [smem:[#allocation0]]
  $region26: #{tpu_custom_call.1} parent=0
    _
  %s5 = ssub.s32 1, %s3
  %s6 = scalar_select 0, %s5, %s3
  $region1: #{tpu_custom_call.1} parent=0
    #allocation2 [shape = 'u8[8192]{0}', space=vmem, size = 0x2000, scoped, tag = 'input window, operand 0, single buffered']
    #allocation3 [shape = 's32[1]{0}', space=sflag, size = 0x4, scoped, tag = 'scoped memory for tpu_custom_call.1']
    #allocation4 [shape = 's32[1]{0}', space=sflag, size = 0x4, scoped, tag = 'scoped memory for tpu_custom_call.1']
    #allocation5 [shape = 's32[1]{0}', space=sflag, size = 0x4, scoped, tag = 'scoped memory for tpu_custom_call.1']
    #allocation6 [shape = 'u8[512]{0}', space=smem, size = 0x200, scoped, tag = 'input window, operand 1, single buffered']
    #allocation7 [shape = 'u8[8192]{0}', space=vmem, size = 0x2000, scoped, tag = 'output window, operand 0, single buffered']
    %7 = vsyncpa [#allocation3], 0
    %8 = vsyncpa [#allocation5], 0
    %9 = vsyncpa [#allocation4], 0
    // Predicated region
    $region2: #{tpu_custom_call.1} parent=1 // pred_check
      _
    $region3: #{tpu_custom_call.1} parent=1 // pred_check_branch
      %11 = sbr.rel (0) target = $region5
    $region4: #{tpu_custom_call.1} parent=1 // pred_region
      %s13 = ssub.s32 256, 256
      %14 = vsyncadd [#allocation3], %s13
      %s16 = sshll.u32 [#allocation2], 4
      %s17 = int_to_ptr.vmem [resolvable:$true] %s16
      %19 = dma.hbm_to_vmem [thread:$0]  %s0, 256, %s17, [#allocation3]
    $region5: #{tpu_custom_call.1} parent=1 // pred_fallthru
      _
    // Predicated region
    $region6: #{tpu_custom_call.1} parent=1 // pred_check
      _
    $region7: #{tpu_custom_call.1} parent=1 // pred_check_branch
      %21 = sbr.rel (0) target = $region9
    $region8: #{tpu_custom_call.1} parent=1 // pred_region
      %s23 = ssub.s32 16, 16
      %24 = vsyncadd [#allocation5], %s23
      %s26 = sshll.u32 %s1, 4
      %s27 = int_to_ptr.vmem [resolvable:$true] %s26
      %29 = dma.vmem_to_smem %s27, 16, [#allocation6], [#allocation5]
    $region9: #{tpu_custom_call.1} parent=1 // pred_fallthru
      _
    // Predicated region
    $region10: #{tpu_custom_call.1} parent=1 // pred_check
      _
    $region11: #{tpu_custom_call.1} parent=1 // pred_check_branch
      %31 = sbr.rel (0) target = $region13
    $region12: #{tpu_custom_call.1} parent=1 // pred_region
      %32 = dma.done [#allocation3], 256
    $region13: #{tpu_custom_call.1} parent=1 // pred_fallthru
      _
    // Predicated region
    $region14: #{tpu_custom_call.1} parent=1 // pred_check
      _
    $region15: #{tpu_custom_call.1} parent=1 // pred_check_branch
      %34 = sbr.rel (0) target = $region17
    $region16: #{tpu_custom_call.1} parent=1 // pred_region
      %35 = dma.done [#allocation5], 16
    $region17: #{tpu_custom_call.1} parent=1 // pred_fallthru
      _
    %36 = sfence
    %v37 = vld [vmem:[#allocation2] sm:$0xff]
    %v38 = vld [vmem:[#allocation2 + $0x8] sm:$0xff]
    %v39 = vadd.f32 %v37, %v38
    %40 = vadd.xlane.f32.xlu0 %v39
    %v41 = vpop.xlane.xlu0 %40
    %v43 = vrot.slane %v41, 7
    %vm45 = vcmask 1040384
    %v46 = vsel %vm45, 0.0, %v43
    %v47 = vsel %vm45, %v43, 0.0
    %v48 = vlaneseq
    %v49 = vshrl.u32 %v48, 7
    %vm50 = vcmp.lt.s32.totalorder %v49, 0
    %v51 = vsub.s32 0, %v49
    %v52 = vsel %vm50, %v51, %v49
    %v53 = vshrl.u32 %v52, 2
    %v54 = vand.u32 %v52, 3
    %v55 = vsub.s32 0, %v54
    %v56 = vsel %vm50, %v55, %v54
    %vm57 = vcmp.ne.s32.totalorder %v56, 0
    %vm58 = vcmp.lt.s32.totalorder %v56, 0
    %vm59 = vmand %vm58, %vm57
    %v60 = vadd.s32 %v56, 4
    %v61 = vsel %vm59, %v60, %v56
    %v62 = vadd.s32 %v61, 4294967295
    %vm63 = vcmp.ge.s32.totalorder %v62, 0
    %vm64 = vcmp.lt.s32.totalorder %v62, 4
    %vm65 = vmand %vm63, %vm64
    %v66 = vsel %vm65, %v46, 0.0
    %s67 = sld [smem:[#allocation6]]
    %v68 = vstv %s67
    %v69 = vmul.f32 %v68, %v66
    %v70 = vadd.f32 %v69, 0.0
    %s71 = sld [smem:[#allocation6 + $0x1]]
    %v72 = vstv %s71
    %v73 = vmul.f32 %v72, %v46
    %v74 = vmul.f32 %v72, %v47
    %vm77 = vcmask 1046528
    %v78 = vrot.slane %v73, 1
    %v79 = vrot.slane %v74, 1
    %v80 = vsel %vm77, %v78, %v79
    %v82 = vadd.f32 %v70, %v80
    %v83 = vadd.s32 %v61, 1
    %vm84 = vcmp.ge.s32.totalorder %v83, 0
    %vm85 = vcmp.lt.s32.totalorder %v83, 4
    %vm86 = vmand %vm84, %vm85
    %vm89 = vcmask 1045504
    %v90 = vrot.slane %v46, 2
    %v91 = vrot.slane %v47, 2
    %v92 = vsel %vm89, %v90, %v91
    %v94 = vsel %vm86, %v92, 0.0
    %s95 = sld [smem:[#allocation6 + $0x2]]
    %v96 = vstv %s95
    %v97 = vmul.f32 %v96, %v94
    %v98 = vadd.f32 %v82, %v97
    %v99 = vxor.u32 %v98, 2147483648
    %v100 = vmul.f32 %v99, 1.442695
    %v101 = vpow.pop %v100
    %v102 = vadd.f32 %v101, 1.0
    %v103 = vrcp.pop %v102
    %v104 = vmul.f32 1.0, %v103
    %106 = vset.pattern.permute.xlu0 0
    %107 = vperm.xlu0 %106, %v104
    %v108 = vpop.permute.xlu0 %107
    %v110 = vmul.f32 %v37, %v108
    %v111 = vmul.f32 %v38, %v108
    %112 = vst [vmem:[#allocation7] sm:$0xff] %v110
    %113 = vst [vmem:[#allocation7 + $0x8] sm:$0xff] %v111
    // Predicated region
    $region18: #{tpu_custom_call.1} parent=1 // pred_check
      _
    $region19: #{tpu_custom_call.1} parent=1 // pred_check_branch
      %115 = sbr.rel (0) target = $region21
    $region20: #{tpu_custom_call.1} parent=1 // pred_region
      %s117 = ssub.s32 256, 256
      %118 = vsyncadd [#allocation4], %s117
      %s120 = sshll.u32 [#allocation7], 4
      %s121 = int_to_ptr.vmem [resolvable:$true] %s120
      %123 = dma.vmem_to_hbm [thread:$0]  %s121, 256, %s2, [#allocation4]
    $region21: #{tpu_custom_call.1} parent=1 // pred_fallthru
      _
    // Predicated region
    $region22: #{tpu_custom_call.1} parent=1 // pred_check
      _
    $region23: #{tpu_custom_call.1} parent=1 // pred_check_branch
      %125 = sbr.rel (0) target = $region25
    $region24: #{tpu_custom_call.1} parent=1 // pred_region
      %126 = dma.done [#allocation4], 256
    $region25: #{tpu_custom_call.1} parent=1 // pred_fallthru
      _
    %127 = vsyncpa [#allocation3], 1
    %128 = vsyncpa [#allocation4], 1
    %129 = vsyncpa [#allocation5], 1

</llo_original>
